<compile_context>
chip_gen: v5e
topology: v5e:2x2
jax: 0.10.0
libtpu: 0.0.40
codegen_flags: <defaults>
</compile_context>

<pallas_src>
import jax
import jax.numpy as jnp
from jax.experimental import pallas as pl
from jax.experimental.pallas import tpu as pltpu


def decoder_lstm_kernel(x_ref, h0_ref, c0_ref, w_ih_ref, w_hh_ref, b_ref,
                        out_ref, xp_ref):
    """One batch chunk of the LSTM; the whole sequence is processed here.

    x_ref    : (Bb, S, I)   batch-first input chunk (PyTorch layout, no permute)
    h0_ref   : (Bb, H)
    c0_ref   : (Bb, H)
    w_ih_ref : (I, 4H)      fused gates, PyTorch order i,f,g,o along lanes
    w_hh_ref : (H, 4H)
    b_ref    : (1, 4H)      b_ih + b_hh
    out_ref  : (Bb, H)      final hidden state h_T of this chunk
    xp_ref   : (Bb, S, 4H)  f32 VMEM scratch for the hoisted input projection
    """
    Bb, S, I = x_ref.shape
    H = h0_ref.shape[-1]

    # ---- Hoisted, non-recurrent input projection -------------------------
    # (Bb,S,I)->(Bb*S,I) is layout-preserving (S=8 == one sublane tile per
    # batch row), so the whole chunk is ONE (Bb*S,I)@(I,4H) MXU pass.
    # Result is parked in VMEM scratch: the unrolled recurrence below only
    # vld's one (Bb,4H) slab per step, keeping vreg live ranges bounded.
    x2d = x_ref[...].reshape(Bb * S, I)
    proj = jnp.dot(x2d, w_ih_ref[...], preferred_element_type=jnp.float32)
    xp_ref[...] = (proj + b_ref[...]).reshape(Bb, S, 4 * H)

    w_hh = w_hh_ref[...]
    h = h0_ref[...].astype(jnp.float32)
    c = c0_ref[...].astype(jnp.float32)

    # ---- Serial recurrence, fully unrolled (S is small and static) -------
    # Per step only the tiny (Bb,H)@(H,4H) matmul, 2 gate-activation EUP
    # pushes (whole fused slab) + 1 tanh(c) push, and a few VPU/XLU ops sit
    # on the critical path.
    # TODO(synk): per bundle dump, the (Bb,12)@(12,48) recurrent matmul could
    # avoid re-feeding W_hh each step via pltpu.matmul_push_rhs/acc_lhs/pop
    # (or a VPU broadcast-MAC chain) if the MXU refill shows on the path.
    for t in range(S):
        g = xp_ref[:, t, :] + jnp.dot(h, w_hh,
                                      preferred_element_type=jnp.float32)
        sig = jax.nn.sigmoid(g)          # one EUP pass: i, f, o (+unused lanes)
        th = jnp.tanh(g)                 # one EUP pass: g      (+unused lanes)
        i_g = sig[:, 0 * H:1 * H]
        f_g = sig[:, 1 * H:2 * H]
        o_g = sig[:, 3 * H:4 * H]
        g_g = th[:, 2 * H:3 * H]
        c = f_g * c + i_g * g_g
        h = o_g * jnp.tanh(c)

    # TODO(synk): if H ever grows / this feeds a larger pipeline, keep the
    # stored last dim a multiple of 128 (lane-dense vst) and slice outside.
    out_ref[...] = h.astype(out_ref.dtype)


def decoder_forward(x, hidden, params, *, block_b=256, proj_dtype=None):
    """Decoder.forward(x, hidden) -> output[:, -1, :] == h_T, shape (B, H).

    x: (B, S, I) batch-first; hidden = (h0, c0), each (num_layers=1, B, H).
    block_b:    batch-chunk size once B > block_b; chunks become a grid axis
                marked "parallel" (both TensorCores on v7x, DMA/compute
                pipelining of x at large batch on all chips).
    proj_dtype: e.g. jnp.bfloat16 to run the hoisted x @ W_ih projection in
                bf16 (fewer MXU passes, half the x DMA bytes — mainly a v5e
                win); recurrence / gate math always stay float32.
    """
    h0, c0 = hidden
    B, S, I = x.shape
    H = h0.shape[-1]
    w_ih_t, w_hh_t, b = params

    if proj_dtype is not None:
        x = x.astype(proj_dtype)
        w_ih_t = w_ih_t.astype(proj_dtype)

    if B <= block_b:
        # Small batch: single chunk, no padding, zero wrapper-side layout HLO.
        bb, nb, Bp = B, 1, B
        xb, h0b, c0b = x, h0[0], c0[0]
    else:
        bb = ((min(block_b, B) + 7) // 8) * 8        # sublane-dense chunks
        nb = (B + bb - 1) // bb
        Bp = nb * bb
        pad = Bp - B
        xb = jnp.pad(x, ((0, pad), (0, 0), (0, 0)))
        h0b = jnp.pad(h0[0], ((0, pad), (0, 0)))
        c0b = jnp.pad(c0[0], ((0, pad), (0, 0)))

    out = pl.pallas_call(
        decoder_lstm_kernel,
        out_shape=jax.ShapeDtypeStruct((Bp, H), h0.dtype),
        grid=(nb,),
        in_specs=[
            pl.BlockSpec((bb, S, I), lambda i: (i, 0, 0)),    # x chunk
            pl.BlockSpec((bb, H), lambda i: (i, 0)),          # h0 chunk
            pl.BlockSpec((bb, H), lambda i: (i, 0)),          # c0 chunk
            pl.BlockSpec((I, 4 * H), lambda i: (0, 0)),       # W_ih (resident)
            pl.BlockSpec((H, 4 * H), lambda i: (0, 0)),       # W_hh (resident)
            pl.BlockSpec((1, 4 * H), lambda i: (0, 0)),       # bias  (resident)
        ],
        out_specs=pl.BlockSpec((bb, H), lambda i: (i, 0)),
        scratch_shapes=[pltpu.VMEM((bb, S, 4 * H), jnp.float32)],
        compiler_params=pltpu.CompilerParams(
            dimension_semantics=("parallel",)),
    )(xb, h0b, c0b, w_ih_t, w_hh_t, b)
    return out[:B] if Bp != B else out


def init_decoder_params(key, input_size, hidden_size):
    """Deterministic PyTorch-style init: U(-k, k), k = 1/sqrt(hidden_size)."""
    H, I = hidden_size, input_size
    k = 1.0 / jnp.sqrt(jnp.float32(H))
    k1, k2, k3, k4 = jax.random.split(key, 4)
    w_ih = jax.random.uniform(k1, (4 * H, I), jnp.float32, -k, k)   # weight_ih_l0
    w_hh = jax.random.uniform(k2, (4 * H, H), jnp.float32, -k, k)   # weight_hh_l0
    b_ih = jax.random.uniform(k3, (4 * H,), jnp.float32, -k, k)     # bias_ih_l0
    b_hh = jax.random.uniform(k4, (4 * H,), jnp.float32, -k, k)     # bias_hh_l0

    # Fused, lane-dense kernel layout: gates concatenated along lanes (i,f,g,o).
    w_ih_t = w_ih.T                                # (I, 4H)
    w_hh_t = w_hh.T                                # (H, 4H)
    b = (b_ih + b_hh).reshape(1, 4 * H)            # (1, 4H)
    return (w_ih_t, w_hh_t, b), (w_ih, w_hh, b_ih, b_hh)


def lstm_reference(x, h0, c0, w_ih, w_hh, b_ih, b_hh):
    """Pure-JAX reference matching torch.nn.LSTM semantics. Returns h_T (B, H)."""
    def step(carry, x_t):
        h, c = carry
        gates = x_t @ w_ih.T + b_ih + h @ w_hh.T + b_hh
        i, f, g, o = jnp.split(gates, 4, axis=-1)
        i = jax.nn.sigmoid(i)
        f = jax.nn.sigmoid(f)
        g = jnp.tanh(g)
        o = jax.nn.sigmoid(o)
        c = f * c + i * g
        h = o * jnp.tanh(c)
        return (h, c), None
    (h, _), _ = jax.lax.scan(step, (h0[0], c0[0]), jnp.transpose(x, (1, 0, 2)))
    return h


if __name__ == "__main__":
    # Module defaults: num_cont_var=4, embedding_dim=4, hidden_size=128
    # -> LSTM(input_size=128, hidden_size=12, num_layers=1, batch_first=True)
    B, S = 2, 8
    INPUT_SIZE = 128                 # = hidden_size arg of Decoder.__init__
    H = 2 * 4 + 4                    # = 2*embedding_dim + num_cont_var = 12

    key = jax.random.PRNGKey(0)
    kx, kh, kc, kp, kx2, kh2, kc2 = jax.random.split(key, 7)
    x = jax.random.normal(kx, (B, S, INPUT_SIZE), jnp.float32)
    h0 = jax.random.normal(kh, (1, B, H), jnp.float32)   # (num_layers, B, H)
    c0 = jax.random.normal(kc, (1, B, H), jnp.float32)

    kernel_params, raw_params = init_decoder_params(kp, INPUT_SIZE, H)

    # 1) Small-batch path (single chunk, unpadded) -- the module's own shapes.
    out = decoder_forward(x, (h0, c0), kernel_params)
    out = jax.block_until_ready(out)
    assert out.shape == (B, H), out.shape
    ref = lstm_reference(x, h0, c0, *raw_params)
    assert jnp.allclose(out, ref, atol=1e-5, rtol=1e-5), (
        "small-batch mismatch", float(jnp.max(jnp.abs(out - ref))))

    # 2) Batch-chunked grid path ("parallel" chunks across TensorCores,
    #    pipelined x DMA; also exercises batch padding / slicing).
    B2 = 20
    x2 = jax.random.normal(kx2, (B2, S, INPUT_SIZE), jnp.float32)
    h02 = jax.random.normal(kh2, (1, B2, H), jnp.float32)
    c02 = jax.random.normal(kc2, (1, B2, H), jnp.float32)
    out2 = decoder_forward(x2, (h02, c02), kernel_params, block_b=8)
    out2 = jax.block_until_ready(out2)
    assert out2.shape == (B2, H), out2.shape
    ref2 = lstm_reference(x2, h02, c02, *raw_params)
    assert jnp.allclose(out2, ref2, atol=1e-4, rtol=1e-4), (
        "chunked-grid mismatch", float(jnp.max(jnp.abs(out2 - ref2))))

    # 3) Optional bf16 input-projection (v5e MXU win); recurrence stays f32,
    #    so only a loose sanity bound vs the f32 reference applies.
    out3 = decoder_forward(x, (h0, c0), kernel_params, proj_dtype=jnp.bfloat16)
    out3 = jax.block_until_ready(out3)
    assert float(jnp.max(jnp.abs(out3 - ref))) < 0.1, "bf16 projection off"

    print("KERNEL_OK")
</pallas_src>

<mosaic_0001>
module attributes {stable_mosaic.version = 11 : i64} {
  func.func @decoder_lstm_kernel(%arg0: i32, %arg1: memref<2x8x128xf32, #tpu.memory_space<vmem>>, %arg2: memref<2x12xf32, #tpu.memory_space<vmem>>, %arg3: memref<2x12xf32, #tpu.memory_space<vmem>>, %arg4: memref<128x48xf32, #tpu.memory_space<vmem>>, %arg5: memref<12x48xf32, #tpu.memory_space<vmem>>, %arg6: memref<1x48xf32, #tpu.memory_space<vmem>>, %arg7: memref<2x12xf32, #tpu.memory_space<vmem>>, %arg8: memref<2x8x48xf32, #tpu.memory_space<vmem>>) attributes {dimension_semantics = [#tpu.dimension_semantics<parallel>], iteration_bounds = array<i64: 1>, scalar_prefetch = 0 : i64, scratch_operands = 1 : i64, tpu.core_type = #tpu.core_type<tc>, window_params = [{transform_indices = @transform_0, window_bounds = array<i64: 2, 8, 128>}, {transform_indices = @transform_1, window_bounds = array<i64: 2, 12>}, {transform_indices = @transform_2, window_bounds = array<i64: 2, 12>}, {pipeline_mode = #tpu.pipeline_mode<synchronous>, transform_indices = @transform_3, window_bounds = array<i64: 128, 48>}, {pipeline_mode = #tpu.pipeline_mode<synchronous>, transform_indices = @transform_4, window_bounds = array<i64: 12, 48>}, {pipeline_mode = #tpu.pipeline_mode<synchronous>, transform_indices = @transform_5, window_bounds = array<i64: 1, 48>}, {transform_indices = @transform_6, window_bounds = array<i64: 2, 12>}]} {
    %c0 = arith.constant 0 : index
    %c0_0 = arith.constant 0 : index
    %c0_1 = arith.constant 0 : index
    %0 = vector.load %arg1[%c0, %c0_0, %c0_1] : memref<2x8x128xf32, #tpu.memory_space<vmem>>, vector<2x8x128xf32>
    %1 = vector.shape_cast %0 : vector<2x8x128xf32> to vector<16x128xf32>
    %c0_2 = arith.constant 0 : index
    %c0_3 = arith.constant 0 : index
    %2 = vector.load %arg4[%c0_2, %c0_3] : memref<128x48xf32, #tpu.memory_space<vmem>>, vector<128x48xf32>
    %cst = arith.constant dense<0.000000e+00> : vector<16x48xf32>
    %3 = tpu.matmul %1, %2, %cst {dimension_numbers = #tpu.dot_dimension_numbers<[1], [0], [0], [1], [0, 0, 1, 1], [], []>} : vector<16x128xf32>, vector<128x48xf32>, vector<16x48xf32> -> vector<16x48xf32>
    %c0_4 = arith.constant 0 : index
    %c0_5 = arith.constant 0 : index
    %4 = vector.load %arg6[%c0_4, %c0_5] : memref<1x48xf32, #tpu.memory_space<vmem>>, vector<1x48xf32>
    %5 = vector.broadcast %4 : vector<1x48xf32> to vector<16x48xf32>
    %6 = arith.addf %3, %5 : vector<16x48xf32>
    %7 = vector.shape_cast %6 : vector<16x48xf32> to vector<2x8x48xf32>
    %c0_6 = arith.constant 0 : index
    %c0_7 = arith.constant 0 : index
    %c0_8 = arith.constant 0 : index
    %8 = vector.load %arg8[%c0_6, %c0_7, %c0_8] : memref<2x8x48xf32, #tpu.memory_space<vmem>>, vector<2x8x48xf32>
    tpu.vector_store %arg8[%c0_6, %c0_7, %c0_8], %7 {strides = array<i32>} : memref<2x8x48xf32, #tpu.memory_space<vmem>>, vector<2x8x48xf32>,
    %c0_9 = arith.constant 0 : index
    %c0_10 = arith.constant 0 : index
    %9 = vector.load %arg5[%c0_9, %c0_10] : memref<12x48xf32, #tpu.memory_space<vmem>>, vector<12x48xf32>
    %c0_11 = arith.constant 0 : index
    %c0_12 = arith.constant 0 : index
    %10 = vector.load %arg2[%c0_11, %c0_12] : memref<2x12xf32, #tpu.memory_space<vmem>>, vector<2x12xf32>
    %c0_13 = arith.constant 0 : index
    %c0_14 = arith.constant 0 : index
    %11 = vector.load %arg3[%c0_13, %c0_14] : memref<2x12xf32, #tpu.memory_space<vmem>>, vector<2x12xf32>
    %c0_15 = arith.constant 0 : index
    %c0_16 = arith.constant 0 : index
    %c0_17 = arith.constant 0 : index
    %12 = vector.load %arg8[%c0_15, %c0_16, %c0_17] : memref<2x8x48xf32, #tpu.memory_space<vmem>>, vector<2x1x48xf32>
    %13 = vector.shape_cast %12 : vector<2x1x48xf32> to vector<2x48xf32>
    %cst_18 = arith.constant dense<0.000000e+00> : vector<2x48xf32>
    %14 = tpu.matmul %10, %9, %cst_18 {dimension_numbers = #tpu.dot_dimension_numbers<[1], [0], [0], [1], [0, 0, 1, 1], [], []>} : vector<2x12xf32>, vector<12x48xf32>, vector<2x48xf32> -> vector<2x48xf32>
    %15 = arith.addf %13, %14 : vector<2x48xf32>
    %16 = arith.negf %15 : vector<2x48xf32>
    %17 = math.exp %16 : vector<2x48xf32>
    %cst_19 = arith.constant 1.000000e+00 : f32
    %18 = vector.broadcast %cst_19 : f32 to vector<2x48xf32>
    %19 = arith.addf %18, %17 : vector<2x48xf32>
    %20 = arith.divf %18, %19 : vector<2x48xf32>
    %21 = math.tanh %15 : vector<2x48xf32>
    %22 = vector.extract_strided_slice %20 {offsets = [0, 0], sizes = [2, 12], strides = [1, 1]} : vector<2x48xf32> to vector<2x12xf32>
    %23 = vector.extract_strided_slice %20 {offsets = [0, 12], sizes = [2, 12], strides = [1, 1]} : vector<2x48xf32> to vector<2x12xf32>
    %24 = vector.extract_strided_slice %20 {offsets = [0, 36], sizes = [2, 12], strides = [1, 1]} : vector<2x48xf32> to vector<2x12xf32>
    %25 = vector.extract_strided_slice %21 {offsets = [0, 24], sizes = [2, 12], strides = [1, 1]} : vector<2x48xf32> to vector<2x12xf32>
    %26 = arith.mulf %23, %11 : vector<2x12xf32>
    %27 = arith.mulf %22, %25 : vector<2x12xf32>
    %28 = arith.addf %26, %27 : vector<2x12xf32>
    %29 = math.tanh %28 : vector<2x12xf32>
    %30 = arith.mulf %24, %29 : vector<2x12xf32>
    %c0_20 = arith.constant 0 : index
    %c1 = arith.constant 1 : index
    %c0_21 = arith.constant 0 : index
    %31 = vector.load %arg8[%c0_20, %c1, %c0_21] : memref<2x8x48xf32, #tpu.memory_space<vmem>>, vector<2x1x48xf32>
    %32 = vector.shape_cast %31 : vector<2x1x48xf32> to vector<2x48xf32>
    %cst_22 = arith.constant dense<0.000000e+00> : vector<2x48xf32>
    %33 = tpu.matmul %30, %9, %cst_22 {dimension_numbers = #tpu.dot_dimension_numbers<[1], [0], [0], [1], [0, 0, 1, 1], [], []>} : vector<2x12xf32>, vector<12x48xf32>, vector<2x48xf32> -> vector<2x48xf32>
    %34 = arith.addf %32, %33 : vector<2x48xf32>
    %35 = arith.negf %34 : vector<2x48xf32>
    %36 = math.exp %35 : vector<2x48xf32>
    %cst_23 = arith.constant 1.000000e+00 : f32
    %37 = vector.broadcast %cst_23 : f32 to vector<2x48xf32>
    %38 = arith.addf %37, %36 : vector<2x48xf32>
    %39 = arith.divf %37, %38 : vector<2x48xf32>
    %40 = math.tanh %34 : vector<2x48xf32>
    %41 = vector.extract_strided_slice %39 {offsets = [0, 0], sizes = [2, 12], strides = [1, 1]} : vector<2x48xf32> to vector<2x12xf32>
    %42 = vector.extract_strided_slice %39 {offsets = [0, 12], sizes = [2, 12], strides = [1, 1]} : vector<2x48xf32> to vector<2x12xf32>
    %43 = vector.extract_strided_slice %39 {offsets = [0, 36], sizes = [2, 12], strides = [1, 1]} : vector<2x48xf32> to vector<2x12xf32>
    %44 = vector.extract_strided_slice %40 {offsets = [0, 24], sizes = [2, 12], strides = [1, 1]} : vector<2x48xf32> to vector<2x12xf32>
    %45 = arith.mulf %42, %28 : vector<2x12xf32>
    %46 = arith.mulf %41, %44 : vector<2x12xf32>
    %47 = arith.addf %45, %46 : vector<2x12xf32>
    %48 = math.tanh %47 : vector<2x12xf32>
    %49 = arith.mulf %43, %48 : vector<2x12xf32>
    %c0_24 = arith.constant 0 : index
    %c2 = arith.constant 2 : index
    %c0_25 = arith.constant 0 : index
    %50 = vector.load %arg8[%c0_24, %c2, %c0_25] : memref<2x8x48xf32, #tpu.memory_space<vmem>>, vector<2x1x48xf32>
    %51 = vector.shape_cast %50 : vector<2x1x48xf32> to vector<2x48xf32>
    %cst_26 = arith.constant dense<0.000000e+00> : vector<2x48xf32>
    %52 = tpu.matmul %49, %9, %cst_26 {dimension_numbers = #tpu.dot_dimension_numbers<[1], [0], [0], [1], [0, 0, 1, 1], [], []>} : vector<2x12xf32>, vector<12x48xf32>, vector<2x48xf32> -> vector<2x48xf32>
    %53 = arith.addf %51, %52 : vector<2x48xf32>
    %54 = arith.negf %53 : vector<2x48xf32>
    %55 = math.exp %54 : vector<2x48xf32>
    %cst_27 = arith.constant 1.000000e+00 : f32
    %56 = vector.broadcast %cst_27 : f32 to vector<2x48xf32>
    %57 = arith.addf %56, %55 : vector<2x48xf32>
    %58 = arith.divf %56, %57 : vector<2x48xf32>
    %59 = math.tanh %53 : vector<2x48xf32>
    %60 = vector.extract_strided_slice %58 {offsets = [0, 0], sizes = [2, 12], strides = [1, 1]} : vector<2x48xf32> to vector<2x12xf32>
    %61 = vector.extract_strided_slice %58 {offsets = [0, 12], sizes = [2, 12], strides = [1, 1]} : vector<2x48xf32> to vector<2x12xf32>
    %62 = vector.extract_strided_slice %58 {offsets = [0, 36], sizes = [2, 12], strides = [1, 1]} : vector<2x48xf32> to vector<2x12xf32>
    %63 = vector.extract_strided_slice %59 {offsets = [0, 24], sizes = [2, 12], strides = [1, 1]} : vector<2x48xf32> to vector<2x12xf32>
    %64 = arith.mulf %61, %47 : vector<2x12xf32>
    %65 = arith.mulf %60, %63 : vector<2x12xf32>
    %66 = arith.addf %64, %65 : vector<2x12xf32>
    %67 = math.tanh %66 : vector<2x12xf32>
    %68 = arith.mulf %62, %67 : vector<2x12xf32>
    %c0_28 = arith.constant 0 : index
    %c3 = arith.constant 3 : index
    %c0_29 = arith.constant 0 : index
    %69 = vector.load %arg8[%c0_28, %c3, %c0_29] : memref<2x8x48xf32, #tpu.memory_space<vmem>>, vector<2x1x48xf32>
    %70 = vector.shape_cast %69 : vector<2x1x48xf32> to vector<2x48xf32>
    %cst_30 = arith.constant dense<0.000000e+00> : vector<2x48xf32>
    %71 = tpu.matmul %68, %9, %cst_30 {dimension_numbers = #tpu.dot_dimension_numbers<[1], [0], [0], [1], [0, 0, 1, 1], [], []>} : vector<2x12xf32>, vector<12x48xf32>, vector<2x48xf32> -> vector<2x48xf32>
    %72 = arith.addf %70, %71 : vector<2x48xf32>
    %73 = arith.negf %72 : vector<2x48xf32>
    %74 = math.exp %73 : vector<2x48xf32>
    %cst_31 = arith.constant 1.000000e+00 : f32
    %75 = vector.broadcast %cst_31 : f32 to vector<2x48xf32>
    %76 = arith.addf %75, %74 : vector<2x48xf32>
    %77 = arith.divf %75, %76 : vector<2x48xf32>
    %78 = math.tanh %72 : vector<2x48xf32>
    %79 = vector.extract_strided_slice %77 {offsets = [0, 0], sizes = [2, 12], strides = [1, 1]} : vector<2x48xf32> to vector<2x12xf32>
    %80 = vector.extract_strided_slice %77 {offsets = [0, 12], sizes = [2, 12], strides = [1, 1]} : vector<2x48xf32> to vector<2x12xf32>
    %81 = vector.extract_strided_slice %77 {offsets = [0, 36], sizes = [2, 12], strides = [1, 1]} : vector<2x48xf32> to vector<2x12xf32>
    %82 = vector.extract_strided_slice %78 {offsets = [0, 24], sizes = [2, 12], strides = [1, 1]} : vector<2x48xf32> to vector<2x12xf32>
    %83 = arith.mulf %80, %66 : vector<2x12xf32>
    %84 = arith.mulf %79, %82 : vector<2x12xf32>
    %85 = arith.addf %83, %84 : vector<2x12xf32>
    %86 = math.tanh %85 : vector<2x12xf32>
    %87 = arith.mulf %81, %86 : vector<2x12xf32>
    %c0_32 = arith.constant 0 : index
    %c4 = arith.constant 4 : index
    %c0_33 = arith.constant 0 : index
    %88 = vector.load %arg8[%c0_32, %c4, %c0_33] : memref<2x8x48xf32, #tpu.memory_space<vmem>>, vector<2x1x48xf32>
    %89 = vector.shape_cast %88 : vector<2x1x48xf32> to vector<2x48xf32>
    %cst_34 = arith.constant dense<0.000000e+00> : vector<2x48xf32>
    %90 = tpu.matmul %87, %9, %cst_34 {dimension_numbers = #tpu.dot_dimension_numbers<[1], [0], [0], [1], [0, 0, 1, 1], [], []>} : vector<2x12xf32>, vector<12x48xf32>, vector<2x48xf32> -> vector<2x48xf32>
    %91 = arith.addf %89, %90 : vector<2x48xf32>
    %92 = arith.negf %91 : vector<2x48xf32>
    %93 = math.exp %92 : vector<2x48xf32>
    %cst_35 = arith.constant 1.000000e+00 : f32
    %94 = vector.broadcast %cst_35 : f32 to vector<2x48xf32>
    %95 = arith.addf %94, %93 : vector<2x48xf32>
    %96 = arith.divf %94, %95 : vector<2x48xf32>
    %97 = math.tanh %91 : vector<2x48xf32>
    %98 = vector.extract_strided_slice %96 {offsets = [0, 0], sizes = [2, 12], strides = [1, 1]} : vector<2x48xf32> to vector<2x12xf32>
    %99 = vector.extract_strided_slice %96 {offsets = [0, 12], sizes = [2, 12], strides = [1, 1]} : vector<2x48xf32> to vector<2x12xf32>
    %100 = vector.extract_strided_slice %96 {offsets = [0, 36], sizes = [2, 12], strides = [1, 1]} : vector<2x48xf32> to vector<2x12xf32>
    %101 = vector.extract_strided_slice %97 {offsets = [0, 24], sizes = [2, 12], strides = [1, 1]} : vector<2x48xf32> to vector<2x12xf32>
    %102 = arith.mulf %99, %85 : vector<2x12xf32>
    %103 = arith.mulf %98, %101 : vector<2x12xf32>
    %104 = arith.addf %102, %103 : vector<2x12xf32>
    %105 = math.tanh %104 : vector<2x12xf32>
    %106 = arith.mulf %100, %105 : vector<2x12xf32>
    %c0_36 = arith.constant 0 : index
    %c5 = arith.constant 5 : index
    %c0_37 = arith.constant 0 : index
    %107 = vector.load %arg8[%c0_36, %c5, %c0_37] : memref<2x8x48xf32, #tpu.memory_space<vmem>>, vector<2x1x48xf32>
    %108 = vector.shape_cast %107 : vector<2x1x48xf32> to vector<2x48xf32>
    %cst_38 = arith.constant dense<0.000000e+00> : vector<2x48xf32>
    %109 = tpu.matmul %106, %9, %cst_38 {dimension_numbers = #tpu.dot_dimension_numbers<[1], [0], [0], [1], [0, 0, 1, 1], [], []>} : vector<2x12xf32>, vector<12x48xf32>, vector<2x48xf32> -> vector<2x48xf32>
    %110 = arith.addf %108, %109 : vector<2x48xf32>
    %111 = arith.negf %110 : vector<2x48xf32>
    %112 = math.exp %111 : vector<2x48xf32>
    %cst_39 = arith.constant 1.000000e+00 : f32
    %113 = vector.broadcast %cst_39 : f32 to vector<2x48xf32>
    %114 = arith.addf %113, %112 : vector<2x48xf32>
    %115 = arith.divf %113, %114 : vector<2x48xf32>
    %116 = math.tanh %110 : vector<2x48xf32>
    %117 = vector.extract_strided_slice %115 {offsets = [0, 0], sizes = [2, 12], strides = [1, 1]} : vector<2x48xf32> to vector<2x12xf32>
    %118 = vector.extract_strided_slice %115 {offsets = [0, 12], sizes = [2, 12], strides = [1, 1]} : vector<2x48xf32> to vector<2x12xf32>
    %119 = vector.extract_strided_slice %115 {offsets = [0, 36], sizes = [2, 12], strides = [1, 1]} : vector<2x48xf32> to vector<2x12xf32>
    %120 = vector.extract_strided_slice %116 {offsets = [0, 24], sizes = [2, 12], strides = [1, 1]} : vector<2x48xf32> to vector<2x12xf32>
    %121 = arith.mulf %118, %104 : vector<2x12xf32>
    %122 = arith.mulf %117, %120 : vector<2x12xf32>
    %123 = arith.addf %121, %122 : vector<2x12xf32>
    %124 = math.tanh %123 : vector<2x12xf32>
    %125 = arith.mulf %119, %124 : vector<2x12xf32>
    %c0_40 = arith.constant 0 : index
    %c6 = arith.constant 6 : index
    %c0_41 = arith.constant 0 : index
    %126 = vector.load %arg8[%c0_40, %c6, %c0_41] : memref<2x8x48xf32, #tpu.memory_space<vmem>>, vector<2x1x48xf32>
    %127 = vector.shape_cast %126 : vector<2x1x48xf32> to vector<2x48xf32>
    %cst_42 = arith.constant dense<0.000000e+00> : vector<2x48xf32>
    %128 = tpu.matmul %125, %9, %cst_42 {dimension_numbers = #tpu.dot_dimension_numbers<[1], [0], [0], [1], [0, 0, 1, 1], [], []>} : vector<2x12xf32>, vector<12x48xf32>, vector<2x48xf32> -> vector<2x48xf32>
    %129 = arith.addf %127, %128 : vector<2x48xf32>
    %130 = arith.negf %129 : vector<2x48xf32>
    %131 = math.exp %130 : vector<2x48xf32>
    %cst_43 = arith.constant 1.000000e+00 : f32
    %132 = vector.broadcast %cst_43 : f32 to vector<2x48xf32>
    %133 = arith.addf %132, %131 : vector<2x48xf32>
    %134 = arith.divf %132, %133 : vector<2x48xf32>
    %135 = math.tanh %129 : vector<2x48xf32>
    %136 = vector.extract_strided_slice %134 {offsets = [0, 0], sizes = [2, 12], strides = [1, 1]} : vector<2x48xf32> to vector<2x12xf32>
    %137 = vector.extract_strided_slice %134 {offsets = [0, 12], sizes = [2, 12], strides = [1, 1]} : vector<2x48xf32> to vector<2x12xf32>
    %138 = vector.extract_strided_slice %134 {offsets = [0, 36], sizes = [2, 12], strides = [1, 1]} : vector<2x48xf32> to vector<2x12xf32>
    %139 = vector.extract_strided_slice %135 {offsets = [0, 24], sizes = [2, 12], strides = [1, 1]} : vector<2x48xf32> to vector<2x12xf32>
    %140 = arith.mulf %137, %123 : vector<2x12xf32>
    %141 = arith.mulf %136, %139 : vector<2x12xf32>
    %142 = arith.addf %140, %141 : vector<2x12xf32>
    %143 = math.tanh %142 : vector<2x12xf32>
    %144 = arith.mulf %138, %143 : vector<2x12xf32>
    %c0_44 = arith.constant 0 : index
    %c7 = arith.constant 7 : index
    %c0_45 = arith.constant 0 : index
    %145 = vector.load %arg8[%c0_44, %c7, %c0_45] : memref<2x8x48xf32, #tpu.memory_space<vmem>>, vector<2x1x48xf32>
    %146 = vector.shape_cast %145 : vector<2x1x48xf32> to vector<2x48xf32>
    %cst_46 = arith.constant dense<0.000000e+00> : vector<2x48xf32>
    %147 = tpu.matmul %144, %9, %cst_46 {dimension_numbers = #tpu.dot_dimension_numbers<[1], [0], [0], [1], [0, 0, 1, 1], [], []>} : vector<2x12xf32>, vector<12x48xf32>, vector<2x48xf32> -> vector<2x48xf32>
    %148 = arith.addf %146, %147 : vector<2x48xf32>
    %149 = arith.negf %148 : vector<2x48xf32>
    %150 = math.exp %149 : vector<2x48xf32>
    %cst_47 = arith.constant 1.000000e+00 : f32
    %151 = vector.broadcast %cst_47 : f32 to vector<2x48xf32>
    %152 = arith.addf %151, %150 : vector<2x48xf32>
    %153 = arith.divf %151, %152 : vector<2x48xf32>
    %154 = math.tanh %148 : vector<2x48xf32>
    %155 = vector.extract_strided_slice %153 {offsets = [0, 0], sizes = [2, 12], strides = [1, 1]} : vector<2x48xf32> to vector<2x12xf32>
    %156 = vector.extract_strided_slice %153 {offsets = [0, 12], sizes = [2, 12], strides = [1, 1]} : vector<2x48xf32> to vector<2x12xf32>
    %157 = vector.extract_strided_slice %153 {offsets = [0, 36], sizes = [2, 12], strides = [1, 1]} : vector<2x48xf32> to vector<2x12xf32>
    %158 = vector.extract_strided_slice %154 {offsets = [0, 24], sizes = [2, 12], strides = [1, 1]} : vector<2x48xf32> to vector<2x12xf32>
    %159 = arith.mulf %156, %142 : vector<2x12xf32>
    %160 = arith.mulf %155, %158 : vector<2x12xf32>
    %161 = arith.addf %159, %160 : vector<2x12xf32>
    %162 = math.tanh %161 : vector<2x12xf32>
    %163 = arith.mulf %157, %162 : vector<2x12xf32>
    %c0_48 = arith.constant 0 : index
    %c0_49 = arith.constant 0 : index
    %164 = vector.load %arg7[%c0_48, %c0_49] : memref<2x12xf32, #tpu.memory_space<vmem>>, vector<2x12xf32>
    tpu.vector_store %arg7[%c0_48, %c0_49], %163 {strides = array<i32>} : memref<2x12xf32, #tpu.memory_space<vmem>>, vector<2x12xf32>,
    return
  }
  func.func @transform_0(%arg0: i32) -> (i32, i32, i32) {
    %c0_i32 = arith.constant 0 : i32
    %c0_i32_0 = arith.constant 0 : i32
    %c0_i32_1 = arith.constant 0 : i32
    return %arg0, %c0_i32, %c0_i32_0 : i32, i32, i32
  }
  func.func @transform_1(%arg0: i32) -> (i32, i32) {
    %c0_i32 = arith.constant 0 : i32
    %c0_i32_0 = arith.constant 0 : i32
    return %arg0, %c0_i32 : i32, i32
  }
  func.func @transform_2(%arg0: i32) -> (i32, i32) {
    %c0_i32 = arith.constant 0 : i32
    %c0_i32_0 = arith.constant 0 : i32
    return %arg0, %c0_i32 : i32, i32
  }
  func.func @transform_3(%arg0: i32) -> (i32, i32) {
    %c0_i32 = arith.constant 0 : i32
    %c0_i32_0 = arith.constant 0 : i32
    %c0_i32_1 = arith.constant 0 : i32
    return %c0_i32, %c0_i32_0 : i32, i32
  }
  func.func @transform_4(%arg0: i32) -> (i32, i32) {
    %c0_i32 = arith.constant 0 : i32
    %c0_i32_0 = arith.constant 0 : i32
    %c0_i32_1 = arith.constant 0 : i32
    return %c0_i32, %c0_i32_0 : i32, i32
  }
  func.func @transform_5(%arg0: i32) -> (i32, i32) {
    %c0_i32 = arith.constant 0 : i32
    %c0_i32_0 = arith.constant 0 : i32
    %c0_i32_1 = arith.constant 0 : i32
    return %c0_i32, %c0_i32_0 : i32, i32
  }
  func.func @transform_6(%arg0: i32) -> (i32, i32) {
    %c0_i32 = arith.constant 0 : i32
    %c0_i32_0 = arith.constant 0 : i32
    return %arg0, %c0_i32 : i32, i32
  }
}

</mosaic_0001>

<llo_original>
// kernel: tpu_custom_call.1
$region0: #{tpu_custom_call.1}
  #allocation0 [shape = 'u32[]', space=smem, size = 0x4, offset = 0x4, fixed_abs, tag = 'smem constant byte address 0x4 - core index']
  #allocation1 [shape = 'u32[72,128]{1,0:T(1,128)}', space=vmem, size = 0x9000, scoped, tag = 'internal scratch']
  #allocation2 [shape = 'f32[2,8,48]{2,1,0:T(8,128)}', space=vmem, size = 0x2000, scoped, tag = 'scratch operand']
  %s0 = inlined_call_operand.vmem [shape: f32[2,8,128], index: 0, kind: input, shape index: {}]
  %s1 = inlined_call_operand.vmem [shape: f32[2,12], index: 1, kind: input, shape index: {}]
  %s2 = inlined_call_operand.vmem [shape: f32[2,12], index: 2, kind: input, shape index: {}]
  %s3 = inlined_call_operand.vmem [shape: f32[128,48], index: 3, kind: input, shape index: {}]
  %s4 = inlined_call_operand.vmem [shape: f32[12,48], index: 4, kind: input, shape index: {}]
  %s5 = inlined_call_operand.vmem [shape: f32[1,48], index: 5, kind: input, shape index: {}]
  %s6 = inlined_call_operand.hbm [shape: f32[2,12], index: 6, kind: output, shape index: {}]
  %s7 = sld [smem:[#allocation0]]
  $region34: #{tpu_custom_call.1} parent=0
    _
  %s9 = ssub.s32 1, %s7
  %s10 = scalar_select 0, %s9, %s7
  $region1: #{tpu_custom_call.1} parent=0
    #allocation3 [shape = 'u8[1024]{0}', space=vmem, size = 0x400, scoped, tag = 'output window, operand 0, single buffered']
    #allocation4 [shape = 's32[1]{0}', space=sflag, size = 0x4, scoped, tag = 'scoped memory for tpu_custom_call.1']
    %11 = vsyncpa [#allocation4], 0
    // Predicated region
    $region2: #{tpu_custom_call.1} parent=1 // pred_check
      _
    $region3: #{tpu_custom_call.1} parent=1 // pred_check_branch
      %13 = sbr.rel (0) target = $region5
    $region4: #{tpu_custom_call.1} parent=1 // pred_region
      _
    $region5: #{tpu_custom_call.1} parent=1 // pred_fallthru
      _
    // Predicated region
    $region6: #{tpu_custom_call.1} parent=1 // pred_check
      _
    $region7: #{tpu_custom_call.1} parent=1 // pred_check_branch
      %15 = sbr.rel (0) target = $region9
    $region8: #{tpu_custom_call.1} parent=1 // pred_region
      _
    $region9: #{tpu_custom_call.1} parent=1 // pred_fallthru
      _
    // Predicated region
    $region10: #{tpu_custom_call.1} parent=1 // pred_check
      _
    $region11: #{tpu_custom_call.1} parent=1 // pred_check_branch
      %17 = sbr.rel (0) target = $region13
    $region12: #{tpu_custom_call.1} parent=1 // pred_region
      _
    $region13: #{tpu_custom_call.1} parent=1 // pred_fallthru
      _
    // Predicated region
    $region14: #{tpu_custom_call.1} parent=1 // pred_check
      _
    $region15: #{tpu_custom_call.1} parent=1 // pred_check_branch
      %19 = sbr.rel (0) target = $region17
    $region16: #{tpu_custom_call.1} parent=1 // pred_region
      _
    $region17: #{tpu_custom_call.1} parent=1 // pred_fallthru
      _
    // Predicated region
    $region18: #{tpu_custom_call.1} parent=1 // pred_check
      _
    $region19: #{tpu_custom_call.1} parent=1 // pred_check_branch
      %21 = sbr.rel (0) target = $region21
    $region20: #{tpu_custom_call.1} parent=1 // pred_region
      _
    $region21: #{tpu_custom_call.1} parent=1 // pred_fallthru
      _
    // Predicated region
    $region22: #{tpu_custom_call.1} parent=1 // pred_check
      _
    $region23: #{tpu_custom_call.1} parent=1 // pred_check_branch
      %23 = sbr.rel (0) target = $region25
    $region24: #{tpu_custom_call.1} parent=1 // pred_region
      _
    $region25: #{tpu_custom_call.1} parent=1 // pred_fallthru
      _
    %v24 = vld [vmem:[%s0] sm:$0xff]
    %v25 = vld [vmem:[%s0 + $0x8] sm:$0xff]
    %v26 = vld [vmem:[%s3] sm:$0xff]
    %v27 = vld [vmem:[%s3 + $0x8] sm:$0xff]
    %v28 = vld [vmem:[%s3 + $0x10] sm:$0xff]
    %v29 = vld [vmem:[%s3 + $0x18] sm:$0xff]
    %v30 = vld [vmem:[%s3 + $0x20] sm:$0xff]
    %v31 = vld [vmem:[%s3 + $0x28] sm:$0xff]
    %v32 = vld [vmem:[%s3 + $0x30] sm:$0xff]
    %v33 = vld [vmem:[%s3 + $0x38] sm:$0xff]
    %v34 = vld [vmem:[%s3 + $0x40] sm:$0xff]
    %v35 = vld [vmem:[%s3 + $0x48] sm:$0xff]
    %v36 = vld [vmem:[%s3 + $0x50] sm:$0xff]
    %v37 = vld [vmem:[%s3 + $0x58] sm:$0xff]
    %v38 = vld [vmem:[%s3 + $0x60] sm:$0xff]
    %v39 = vld [vmem:[%s3 + $0x68] sm:$0xff]
    %v40 = vld [vmem:[%s3 + $0x70] sm:$0xff]
    %v41 = vld [vmem:[%s3 + $0x78] sm:$0xff]
    %v42 = vld [vmem:[%s5] sm:$0x1]
    %v44 = vperm.slane %v42, 0
    %46 = vmatpush.msra.mxu0 %v41
    %47 = vmatpush.msra.mxu0 %v40
    %48 = vmatpush.msra.mxu0 %v39
    %49 = vmatpush.msra.mxu0 %v38
    %50 = vmatpush.msra.mxu0 %v37
    %51 = vmatpush.msra.mxu0 %v36
    %52 = vmatpush.msra.mxu0 %v35
    %53 = vmatpush.msra.mxu0 %v34
    %54 = vmatpush.msra.mxu0 %v33
    %55 = vmatpush.msra.mxu0 %v32
    %56 = vmatpush.msra.mxu0 %v31
    %57 = vmatpush.msra.mxu0 %v30
    %58 = vmatpush.msra.mxu0 %v29
    %59 = vmatpush.msra.mxu0 %v28
    %60 = vmatpush.msra.mxu0 %v27
    %61 = vmatpush.msra.mxu0 %v26
    %62 = vmatmul.f32.gmra.mxu0 %v24
    %v63 = vpop.f32.mrf.mxu0
    %v64 = vadd.f32 %v44, %v63
    %65 = vmatmul.f32.gmra.mxu0 %v25
    %v66 = vpop.f32.mrf.mxu0
    %v67 = vadd.f32 %v44, %v66
    %68 = vdwg.mxu0
    %vm69 = vcmask 392192
    %70 = vst.msk [vmem:[#allocation2] sm:$0xff] %vm69, %v64
    %71 = vst.msk [vmem:[#allocation2 + $0x8] sm:$0xff] %vm69, %v67
    %v72 = vld [vmem:[%s4] sm:$0xff]
    %v73 = vld [vmem:[%s4 + $0x8] sm:$0xf]
    %v74 = vld [vmem:[%s1] sm:$0x3]
    %v75 = vld [vmem:[%s2] sm:$0x3]
    %v76 = vld [vmem:[#allocation2] sm:$0x1]
    %v77 = vld [vmem:[#allocation2 + $0x8] sm:$0x1]
    %vm78 = vcmask 97280
    %v80 = vsel %vm78, %v74, 0
    %vm82 = vcmask 1043456
    %v84 = vsel %vm82, %v73, 0
    %86 = vmatpush.msra.mxu0 0.0
    %87 = vmatpush.msra.mxu0 0.0
    %88 = vmatpush.msra.mxu0 0.0
    %89 = vmatpush.msra.mxu0 0.0
    %90 = vmatpush.msra.mxu0 0.0
    %91 = vmatpush.msra.mxu0 0.0
    %92 = vmatpush.msra.mxu0 0.0
    %93 = vmatpush.msra.mxu0 0.0
    %94 = vmatpush.msra.mxu0 0.0
    %95 = vmatpush.msra.mxu0 0.0
    %96 = vmatpush.msra.mxu0 0.0
    %97 = vmatpush.msra.mxu0 0.0
    %98 = vmatpush.msra.mxu0 0.0
    %99 = vmatpush.msra.mxu0 0.0
    %100 = vmatpush.msra.mxu0 %v84
    %101 = vmatpush.msra.mxu0 %v72
    %102 = vmatmul.f32.gmra.mxu0 %v80
    %v103 = vpop.f32.mrf.mxu0
    %v104 = vadd.f32 0.0, %v103
    %105 = vdwg.mxu0
    %v107 = vrot.slane %v104, 1
    %v110 = vadd.f32 %v76, %v104
    %v111 = vadd.f32 %v77, %v107
    %v112 = vxor.u32 %v110, 2147483648
    %v113 = vxor.u32 %v111, 2147483648
    %v114 = vmul.f32 %v112, 1.442695
    %v115 = vpow.pop %v114
    %v116 = vmul.f32 %v113, 1.442695
    %v117 = vpow.pop %v116
    %v118 = vadd.f32 %v115, 1.0
    %v119 = vadd.f32 %v117, 1.0
    %v120 = vrcp.pop %v118
    %v121 = vmul.f32 %v118, %v120
    %v122 = vsub.f32 1.0, %v121
    %v123 = vmul.f32 %v120, %v122
    %v124 = vadd.f32 %v120, %v123
    %vm125 = vweird.f32 %v118
    %vm126 = vweird.f32 %v120
    %vm127 = vmor %vm125, %vm126
    %v128 = vsel %vm127, %v120, %v124
    %v129 = vand.u32 2147483647, %v118
    %vm130 = vcmp.eq.f32.partialorder %v129, 8.507059e+37
    %v131 = vand.u32 %v118, 2147483648
    %v132 = vor.u32 1.1754944e-38, %v131
    %v133 = vsel %vm130, %v132, %v128
    %v134 = vmul.f32 1.0, %v133
    %v135 = vrcp.pop %v119
    %v136 = vmul.f32 %v119, %v135
    %v137 = vsub.f32 1.0, %v136
    %v138 = vmul.f32 %v135, %v137
    %v139 = vadd.f32 %v135, %v138
    %vm140 = vweird.f32 %v119
    %vm141 = vweird.f32 %v135
    %vm142 = vmor %vm140, %vm141
    %v143 = vsel %vm142, %v135, %v139
    %v144 = vand.u32 2147483647, %v119
    %vm145 = vcmp.eq.f32.partialorder %v144, 8.507059e+37
    %v146 = vand.u32 %v119, 2147483648
    %v147 = vor.u32 1.1754944e-38, %v146
    %v148 = vsel %vm145, %v147, %v143
    %v149 = vmul.f32 1.0, %v148
    %v150 = vtanh.pop %v110
    %v151 = vtanh.pop %v111
    %v153 = vrot.slane %v75, 1
    %154 = vrot.lane.b32.xlu0 %v75, 12
    %v155 = vpop.permute.xlu0 %154
    %156 = vrot.lane.b32.xlu0 %v153, 12
    %v157 = vpop.permute.xlu0 %156
    %v160 = vmul.f32 %v134, %v155
    %v161 = vmul.f32 %v149, %v157
    %164 = vrot.lane.b32.xlu0 %v150, 104
    %v165 = vpop.permute.xlu0 %164
    %166 = vrot.lane.b32.xlu0 %v151, 104
    %v167 = vpop.permute.xlu0 %166
    %v170 = vmul.f32 %v134, %v165
    %v171 = vmul.f32 %v149, %v167
    %174 = vrot.lane.b32.xlu0 %v170, 12
    %v175 = vpop.permute.xlu0 %174
    %176 = vrot.lane.b32.xlu0 %v171, 12
    %v177 = vpop.permute.xlu0 %176
    %v180 = vadd.f32 %v160, %v175
    %v181 = vadd.f32 %v161, %v177
    %v182 = vtanh.pop %v180
    %v183 = vtanh.pop %v181
    %186 = vrot.lane.b32.xlu0 %v182, 24
    %v187 = vpop.permute.xlu0 %186
    %188 = vrot.lane.b32.xlu0 %v183, 24
    %v189 = vpop.permute.xlu0 %188
    %v192 = vmul.f32 %v134, %v187
    %v193 = vmul.f32 %v149, %v189
    %v194 = vld [vmem:[#allocation2 + $0x1] sm:$0x1]
    %v195 = vld [vmem:[#allocation2 + $0x9] sm:$0x1]
    %v198 = vrot.slane %v193, 7
    %vm199 = vcmask 1041409
    %v200 = vsel %vm199, %v198, %v192
    %201 = vrot.lane.b32.xlu0 %v200, 92
    %v202 = vpop.permute.xlu0 %201
    %v203 = vsel %vm78, %v202, 0
    %205 = vmatpush.msra.mxu0 0.0
    %206 = vmatpush.msra.mxu0 0.0
    %207 = vmatpush.msra.mxu0 0.0
    %208 = vmatpush.msra.mxu0 0.0
    %209 = vmatpush.msra.mxu0 0.0
    %210 = vmatpush.msra.mxu0 0.0
    %211 = vmatpush.msra.mxu0 0.0
    %212 = vmatpush.msra.mxu0 0.0
    %213 = vmatpush.msra.mxu0 0.0
    %214 = vmatpush.msra.mxu0 0.0
    %215 = vmatpush.msra.mxu0 0.0
    %216 = vmatpush.msra.mxu0 0.0
    %217 = vmatpush.msra.mxu0 0.0
    %218 = vmatpush.msra.mxu0 0.0
    %219 = vmatpush.msra.mxu0 %v84
    %220 = vmatpush.msra.mxu0 %v72
    %221 = vmatmul.f32.gmra.mxu0 %v203
    %v222 = vpop.f32.mrf.mxu0
    %v223 = vadd.f32 0.0, %v222
    %224 = vdwg.mxu0
    %v226 = vrot.slane %v223, 1
    %v229 = vadd.f32 %v194, %v223
    %v230 = vadd.f32 %v195, %v226
    %v231 = vxor.u32 %v229, 2147483648
    %v232 = vxor.u32 %v230, 2147483648
    %v233 = vmul.f32 %v231, 1.442695
    %v234 = vpow.pop %v233
    %v235 = vmul.f32 %v232, 1.442695
    %v236 = vpow.pop %v235
    %v237 = vadd.f32 %v234, 1.0
    %v238 = vadd.f32 %v236, 1.0
    %v239 = vrcp.pop %v237
    %v240 = vmul.f32 %v237, %v239
    %v241 = vsub.f32 1.0, %v240
    %v242 = vmul.f32 %v239, %v241
    %v243 = vadd.f32 %v239, %v242
    %vm244 = vweird.f32 %v237
    %vm245 = vweird.f32 %v239
    %vm246 = vmor %vm244, %vm245
    %v247 = vsel %vm246, %v239, %v243
    %v248 = vand.u32 2147483647, %v237
    %vm249 = vcmp.eq.f32.partialorder %v248, 8.507059e+37
    %v250 = vand.u32 %v237, 2147483648
    %v251 = vor.u32 1.1754944e-38, %v250
    %v252 = vsel %vm249, %v251, %v247
    %v253 = vmul.f32 1.0, %v252
    %v254 = vrcp.pop %v238
    %v255 = vmul.f32 %v238, %v254
    %v256 = vsub.f32 1.0, %v255
    %v257 = vmul.f32 %v254, %v256
    %v258 = vadd.f32 %v254, %v257
    %vm259 = vweird.f32 %v238
    %vm260 = vweird.f32 %v254
    %vm261 = vmor %vm259, %vm260
    %v262 = vsel %vm261, %v254, %v258
    %v263 = vand.u32 2147483647, %v238
    %vm264 = vcmp.eq.f32.partialorder %v263, 8.507059e+37
    %v265 = vand.u32 %v238, 2147483648
    %v266 = vor.u32 1.1754944e-38, %v265
    %v267 = vsel %vm264, %v266, %v262
    %v268 = vmul.f32 1.0, %v267
    %v269 = vtanh.pop %v229
    %v270 = vtanh.pop %v230
    %v271 = vmul.f32 %v253, %v180
    %v272 = vmul.f32 %v268, %v181
    %275 = vrot.lane.b32.xlu0 %v269, 104
    %v276 = vpop.permute.xlu0 %275
    %277 = vrot.lane.b32.xlu0 %v270, 104
    %v278 = vpop.permute.xlu0 %277
    %v281 = vmul.f32 %v253, %v276
    %v282 = vmul.f32 %v268, %v278
    %285 = vrot.lane.b32.xlu0 %v281, 12
    %v286 = vpop.permute.xlu0 %285
    %287 = vrot.lane.b32.xlu0 %v282, 12
    %v288 = vpop.permute.xlu0 %287
    %v291 = vadd.f32 %v271, %v286
    %v292 = vadd.f32 %v272, %v288
    %v293 = vtanh.pop %v291
    %v294 = vtanh.pop %v292
    %297 = vrot.lane.b32.xlu0 %v293, 24
    %v298 = vpop.permute.xlu0 %297
    %299 = vrot.lane.b32.xlu0 %v294, 24
    %v300 = vpop.permute.xlu0 %299
    %v303 = vmul.f32 %v253, %v298
    %v304 = vmul.f32 %v268, %v300
    %v305 = vld [vmem:[#allocation2 + $0x2] sm:$0x1]
    %v306 = vld [vmem:[#allocation2 + $0xa] sm:$0x1]
    %v309 = vrot.slane %v304, 7
    %v310 = vsel %vm199, %v309, %v303
    %311 = vrot.lane.b32.xlu0 %v310, 92
    %v312 = vpop.permute.xlu0 %311
    %v313 = vsel %vm78, %v312, 0
    %315 = vmatpush.msra.mxu0 0.0
    %316 = vmatpush.msra.mxu0 0.0
    %317 = vmatpush.msra.mxu0 0.0
    %318 = vmatpush.msra.mxu0 0.0
    %319 = vmatpush.msra.mxu0 0.0
    %320 = vmatpush.msra.mxu0 0.0
    %321 = vmatpush.msra.mxu0 0.0
    %322 = vmatpush.msra.mxu0 0.0
    %323 = vmatpush.msra.mxu0 0.0
    %324 = vmatpush.msra.mxu0 0.0
    %325 = vmatpush.msra.mxu0 0.0
    %326 = vmatpush.msra.mxu0 0.0
    %327 = vmatpush.msra.mxu0 0.0
    %328 = vmatpush.msra.mxu0 0.0
    %329 = vmatpush.msra.mxu0 %v84
    %330 = vmatpush.msra.mxu0 %v72
    %331 = vmatmul.f32.gmra.mxu0 %v313
    %v332 = vpop.f32.mrf.mxu0
    %v333 = vadd.f32 0.0, %v332
    %334 = vdwg.mxu0
    %v336 = vrot.slane %v333, 1
    %v339 = vadd.f32 %v305, %v333
    %v340 = vadd.f32 %v306, %v336
    %v341 = vxor.u32 %v339, 2147483648
    %v342 = vxor.u32 %v340, 2147483648
    %v343 = vmul.f32 %v341, 1.442695
    %v344 = vpow.pop %v343
    %v345 = vmul.f32 %v342, 1.442695
    %v346 = vpow.pop %v345
    %v347 = vadd.f32 %v344, 1.0
    %v348 = vadd.f32 %v346, 1.0
    %v349 = vrcp.pop %v347
    %v350 = vmul.f32 %v347, %v349
    %v351 = vsub.f32 1.0, %v350
    %v352 = vmul.f32 %v349, %v351
    %v353 = vadd.f32 %v349, %v352
    %vm354 = vweird.f32 %v347
    %vm355 = vweird.f32 %v349
    %vm356 = vmor %vm354, %vm355
    %v357 = vsel %vm356, %v349, %v353
    %v358 = vand.u32 2147483647, %v347
    %vm359 = vcmp.eq.f32.partialorder %v358, 8.507059e+37
    %v360 = vand.u32 %v347, 2147483648
    %v361 = vor.u32 1.1754944e-38, %v360
    %v362 = vsel %vm359, %v361, %v357
    %v363 = vmul.f32 1.0, %v362
    %v364 = vrcp.pop %v348
    %v365 = vmul.f32 %v348, %v364
    %v366 = vsub.f32 1.0, %v365
    %v367 = vmul.f32 %v364, %v366
    %v368 = vadd.f32 %v364, %v367
    %vm369 = vweird.f32 %v348
    %vm370 = vweird.f32 %v364
    %vm371 = vmor %vm369, %vm370
    %v372 = vsel %vm371, %v364, %v368
    %v373 = vand.u32 2147483647, %v348
    %vm374 = vcmp.eq.f32.partialorder %v373, 8.507059e+37
    %v375 = vand.u32 %v348, 2147483648
    %v376 = vor.u32 1.1754944e-38, %v375
    %v377 = vsel %vm374, %v376, %v372
    %v378 = vmul.f32 1.0, %v377
    %v379 = vtanh.pop %v339
    %v380 = vtanh.pop %v340
    %v381 = vmul.f32 %v363, %v291
    %v382 = vmul.f32 %v378, %v292
    %385 = vrot.lane.b32.xlu0 %v379, 104
    %v386 = vpop.permute.xlu0 %385
    %387 = vrot.lane.b32.xlu0 %v380, 104
    %v388 = vpop.permute.xlu0 %387
    %v391 = vmul.f32 %v363, %v386
    %v392 = vmul.f32 %v378, %v388
    %395 = vrot.lane.b32.xlu0 %v391, 12
    %v396 = vpop.permute.xlu0 %395
    %397 = vrot.lane.b32.xlu0 %v392, 12
    %v398 = vpop.permute.xlu0 %397
    %v401 = vadd.f32 %v381, %v396
    %v402 = vadd.f32 %v382, %v398
    %v403 = vtanh.pop %v401
    %v404 = vtanh.pop %v402
    %407 = vrot.lane.b32.xlu0 %v403, 24
    %v408 = vpop.permute.xlu0 %407
    %409 = vrot.lane.b32.xlu0 %v404, 24
    %v410 = vpop.permute.xlu0 %409
    %v413 = vmul.f32 %v363, %v408
    %v414 = vmul.f32 %v378, %v410
    %v415 = vld [vmem:[#allocation2 + $0x3] sm:$0x1]
    %v416 = vld [vmem:[#allocation2 + $0xb] sm:$0x1]
    %v419 = vrot.slane %v414, 7
    %v420 = vsel %vm199, %v419, %v413
    %421 = vrot.lane.b32.xlu0 %v420, 92
    %v422 = vpop.permute.xlu0 %421
    %v423 = vsel %vm78, %v422, 0
    %425 = vmatpush.msra.mxu0 0.0
    %426 = vmatpush.msra.mxu0 0.0
    %427 = vmatpush.msra.mxu0 0.0
    %428 = vmatpush.msra.mxu0 0.0
    %429 = vmatpush.msra.mxu0 0.0
    %430 = vmatpush.msra.mxu0 0.0
    %431 = vmatpush.msra.mxu0 0.0
    %432 = vmatpush.msra.mxu0 0.0
    %433 = vmatpush.msra.mxu0 0.0
    %434 = vmatpush.msra.mxu0 0.0
    %435 = vmatpush.msra.mxu0 0.0
    %436 = vmatpush.msra.mxu0 0.0
    %437 = vmatpush.msra.mxu0 0.0
    %438 = vmatpush.msra.mxu0 0.0
    %439 = vmatpush.msra.mxu0 %v84
    %440 = vmatpush.msra.mxu0 %v72
    %441 = vmatmul.f32.gmra.mxu0 %v423
    %v442 = vpop.f32.mrf.mxu0
    %v443 = vadd.f32 0.0, %v442
    %444 = vdwg.mxu0
    %v446 = vrot.slane %v443, 1
    %v449 = vadd.f32 %v415, %v443
    %v450 = vadd.f32 %v416, %v446
    %v451 = vxor.u32 %v449, 2147483648
    %v452 = vxor.u32 %v450, 2147483648
    %v453 = vmul.f32 %v451, 1.442695
    %v454 = vpow.pop %v453
    %v455 = vmul.f32 %v452, 1.442695
    %v456 = vpow.pop %v455
    %v457 = vadd.f32 %v454, 1.0
    %v458 = vadd.f32 %v456, 1.0
    %v459 = vrcp.pop %v457
    %v460 = vmul.f32 %v457, %v459
    %v461 = vsub.f32 1.0, %v460
    %v462 = vmul.f32 %v459, %v461
    %v463 = vadd.f32 %v459, %v462
    %vm464 = vweird.f32 %v457
    %vm465 = vweird.f32 %v459
    %vm466 = vmor %vm464, %vm465
    %v467 = vsel %vm466, %v459, %v463
    %v468 = vand.u32 2147483647, %v457
    %vm469 = vcmp.eq.f32.partialorder %v468, 8.507059e+37
    %v470 = vand.u32 %v457, 2147483648
    %v471 = vor.u32 1.1754944e-38, %v470
    %v472 = vsel %vm469, %v471, %v467
    %v473 = vmul.f32 1.0, %v472
    %v474 = vrcp.pop %v458
    %v475 = vmul.f32 %v458, %v474
    %v476 = vsub.f32 1.0, %v475
    %v477 = vmul.f32 %v474, %v476
    %v478 = vadd.f32 %v474, %v477
    %vm479 = vweird.f32 %v458
    %vm480 = vweird.f32 %v474
    %vm481 = vmor %vm479, %vm480
    %v482 = vsel %vm481, %v474, %v478
    %v483 = vand.u32 2147483647, %v458
    %vm484 = vcmp.eq.f32.partialorder %v483, 8.507059e+37
    %v485 = vand.u32 %v458, 2147483648
    %v486 = vor.u32 1.1754944e-38, %v485
    %v487 = vsel %vm484, %v486, %v482
    %v488 = vmul.f32 1.0, %v487
    %v489 = vtanh.pop %v449
    %v490 = vtanh.pop %v450
    %v491 = vmul.f32 %v473, %v401
    %v492 = vmul.f32 %v488, %v402
    %495 = vrot.lane.b32.xlu0 %v489, 104
    %v496 = vpop.permute.xlu0 %495
    %497 = vrot.lane.b32.xlu0 %v490, 104
    %v498 = vpop.permute.xlu0 %497
    %v501 = vmul.f32 %v473, %v496
    %v502 = vmul.f32 %v488, %v498
    %505 = vrot.lane.b32.xlu0 %v501, 12
    %v506 = vpop.permute.xlu0 %505
    %507 = vrot.lane.b32.xlu0 %v502, 12
    %v508 = vpop.permute.xlu0 %507
    %v511 = vadd.f32 %v491, %v506
    %v512 = vadd.f32 %v492, %v508
    %v513 = vtanh.pop %v511
    %v514 = vtanh.pop %v512
    %517 = vrot.lane.b32.xlu0 %v513, 24
    %v518 = vpop.permute.xlu0 %517
    %519 = vrot.lane.b32.xlu0 %v514, 24
    %v520 = vpop.permute.xlu0 %519
    %v523 = vmul.f32 %v473, %v518
    %v524 = vmul.f32 %v488, %v520
    %v525 = vld [vmem:[#allocation2 + $0x4] sm:$0x1]
    %v526 = vld [vmem:[#allocation2 + $0xc] sm:$0x1]
    %v529 = vrot.slane %v524, 7
    %v530 = vsel %vm199, %v529, %v523
    %531 = vrot.lane.b32.xlu0 %v530, 92
    %v532 = vpop.permute.xlu0 %531
    %v533 = vsel %vm78, %v532, 0
    %535 = vmatpush.msra.mxu0 0.0
    %536 = vmatpush.msra.mxu0 0.0
    %537 = vmatpush.msra.mxu0 0.0
    %538 = vmatpush.msra.mxu0 0.0
    %539 = vmatpush.msra.mxu0 0.0
    %540 = vmatpush.msra.mxu0 0.0
    %541 = vmatpush.msra.mxu0 0.0
    %542 = vmatpush.msra.mxu0 0.0
    %543 = vmatpush.msra.mxu0 0.0
    %544 = vmatpush.msra.mxu0 0.0
    %545 = vmatpush.msra.mxu0 0.0
    %546 = vmatpush.msra.mxu0 0.0
    %547 = vmatpush.msra.mxu0 0.0
    %548 = vmatpush.msra.mxu0 0.0
    %549 = vmatpush.msra.mxu0 %v84
    %550 = vmatpush.msra.mxu0 %v72
    %551 = vmatmul.f32.gmra.mxu0 %v533
    %v552 = vpop.f32.mrf.mxu0
    %v553 = vadd.f32 0.0, %v552
    %554 = vdwg.mxu0
    %v556 = vrot.slane %v553, 1
    %v559 = vadd.f32 %v525, %v553
    %v560 = vadd.f32 %v526, %v556
    %v561 = vxor.u32 %v559, 2147483648
    %v562 = vxor.u32 %v560, 2147483648
    %v563 = vmul.f32 %v561, 1.442695
    %v564 = vpow.pop %v563
    %v565 = vmul.f32 %v562, 1.442695
    %v566 = vpow.pop %v565
    %v567 = vadd.f32 %v564, 1.0
    %v568 = vadd.f32 %v566, 1.0
    %v569 = vrcp.pop %v567
    %v570 = vmul.f32 %v567, %v569
    %v571 = vsub.f32 1.0, %v570
    %v572 = vmul.f32 %v569, %v571
    %v573 = vadd.f32 %v569, %v572
    %vm574 = vweird.f32 %v567
    %vm575 = vweird.f32 %v569
    %vm576 = vmor %vm574, %vm575
    %v577 = vsel %vm576, %v569, %v573
    %v578 = vand.u32 2147483647, %v567
    %vm579 = vcmp.eq.f32.partialorder %v578, 8.507059e+37
    %v580 = vand.u32 %v567, 2147483648
    %v581 = vor.u32 1.1754944e-38, %v580
    %v582 = vsel %vm579, %v581, %v577
    %v583 = vmul.f32 1.0, %v582
    %v584 = vrcp.pop %v568
    %v585 = vmul.f32 %v568, %v584
    %v586 = vsub.f32 1.0, %v585
    %v587 = vmul.f32 %v584, %v586
    %v588 = vadd.f32 %v584, %v587
    %vm589 = vweird.f32 %v568
    %vm590 = vweird.f32 %v584
    %vm591 = vmor %vm589, %vm590
    %v592 = vsel %vm591, %v584, %v588
    %v593 = vand.u32 2147483647, %v568
    %vm594 = vcmp.eq.f32.partialorder %v593, 8.507059e+37
    %v595 = vand.u32 %v568, 2147483648
    %v596 = vor.u32 1.1754944e-38, %v595
    %v597 = vsel %vm594, %v596, %v592
    %v598 = vmul.f32 1.0, %v597
    %v599 = vtanh.pop %v559
    %v600 = vtanh.pop %v560
    %v601 = vmul.f32 %v583, %v511
    %v602 = vmul.f32 %v598, %v512
    %605 = vrot.lane.b32.xlu0 %v599, 104
    %v606 = vpop.permute.xlu0 %605
    %607 = vrot.lane.b32.xlu0 %v600, 104
    %v608 = vpop.permute.xlu0 %607
    %v611 = vmul.f32 %v583, %v606
    %v612 = vmul.f32 %v598, %v608
    %615 = vrot.lane.b32.xlu0 %v611, 12
    %v616 = vpop.permute.xlu0 %615
    %617 = vrot.lane.b32.xlu0 %v612, 12
    %v618 = vpop.permute.xlu0 %617
    %v621 = vadd.f32 %v601, %v616
    %v622 = vadd.f32 %v602, %v618
    %v623 = vtanh.pop %v621
    %v624 = vtanh.pop %v622
    %627 = vrot.lane.b32.xlu0 %v623, 24
    %v628 = vpop.permute.xlu0 %627
    %629 = vrot.lane.b32.xlu0 %v624, 24
    %v630 = vpop.permute.xlu0 %629
    %v633 = vmul.f32 %v583, %v628
    %v634 = vmul.f32 %v598, %v630
    %v635 = vld [vmem:[#allocation2 + $0x5] sm:$0x1]
    %v636 = vld [vmem:[#allocation2 + $0xd] sm:$0x1]
    %v639 = vrot.slane %v634, 7
    %v640 = vsel %vm199, %v639, %v633
    %641 = vrot.lane.b32.xlu0 %v640, 92
    %v642 = vpop.permute.xlu0 %641
    %v643 = vsel %vm78, %v642, 0
    %645 = vmatpush.msra.mxu0 0.0
    %646 = vmatpush.msra.mxu0 0.0
    %647 = vmatpush.msra.mxu0 0.0
    %648 = vmatpush.msra.mxu0 0.0
    %649 = vmatpush.msra.mxu0 0.0
    %650 = vmatpush.msra.mxu0 0.0
    %651 = vmatpush.msra.mxu0 0.0
    %652 = vmatpush.msra.mxu0 0.0
    %653 = vmatpush.msra.mxu0 0.0
    %654 = vmatpush.msra.mxu0 0.0
    %655 = vmatpush.msra.mxu0 0.0
    %656 = vmatpush.msra.mxu0 0.0
    %657 = vmatpush.msra.mxu0 0.0
    %658 = vmatpush.msra.mxu0 0.0
    %659 = vmatpush.msra.mxu0 %v84
    %660 = vmatpush.msra.mxu0 %v72
    %661 = vmatmul.f32.gmra.mxu0 %v643
    %v662 = vpop.f32.mrf.mxu0
    %v663 = vadd.f32 0.0, %v662
    %664 = vdwg.mxu0
    %v666 = vrot.slane %v663, 1
    %v669 = vadd.f32 %v635, %v663
    %v670 = vadd.f32 %v636, %v666
    %v671 = vxor.u32 %v669, 2147483648
    %v672 = vxor.u32 %v670, 2147483648
    %v673 = vmul.f32 %v671, 1.442695
    %v674 = vpow.pop %v673
    %v675 = vmul.f32 %v672, 1.442695
    %v676 = vpow.pop %v675
    %v677 = vadd.f32 %v674, 1.0
    %v678 = vadd.f32 %v676, 1.0
    %v679 = vrcp.pop %v677
    %v680 = vmul.f32 %v677, %v679
    %v681 = vsub.f32 1.0, %v680
    %v682 = vmul.f32 %v679, %v681
    %v683 = vadd.f32 %v679, %v682
    %vm684 = vweird.f32 %v677
    %vm685 = vweird.f32 %v679
    %vm686 = vmor %vm684, %vm685
    %v687 = vsel %vm686, %v679, %v683
    %v688 = vand.u32 2147483647, %v677
    %vm689 = vcmp.eq.f32.partialorder %v688, 8.507059e+37
    %v690 = vand.u32 %v677, 2147483648
    %v691 = vor.u32 1.1754944e-38, %v690
    %v692 = vsel %vm689, %v691, %v687
    %v693 = vmul.f32 1.0, %v692
    %v694 = vrcp.pop %v678
    %v695 = vmul.f32 %v678, %v694
    %v696 = vsub.f32 1.0, %v695
    %v697 = vmul.f32 %v694, %v696
    %v698 = vadd.f32 %v694, %v697
    %vm699 = vweird.f32 %v678
    %vm700 = vweird.f32 %v694
    %vm701 = vmor %vm699, %vm700
    %v702 = vsel %vm701, %v694, %v698
    %v703 = vand.u32 2147483647, %v678
    %vm704 = vcmp.eq.f32.partialorder %v703, 8.507059e+37
    %v705 = vand.u32 %v678, 2147483648
    %v706 = vor.u32 1.1754944e-38, %v705
    %v707 = vsel %vm704, %v706, %v702
    %v708 = vmul.f32 1.0, %v707
    %v709 = vtanh.pop %v669
    %v710 = vtanh.pop %v670
    %v711 = vmul.f32 %v693, %v621
    %v712 = vmul.f32 %v708, %v622
    %715 = vrot.lane.b32.xlu0 %v709, 104
    %v716 = vpop.permute.xlu0 %715
    %717 = vrot.lane.b32.xlu0 %v710, 104
    %v718 = vpop.permute.xlu0 %717
    %v721 = vmul.f32 %v693, %v716
    %v722 = vmul.f32 %v708, %v718
    %725 = vrot.lane.b32.xlu0 %v721, 12
    %v726 = vpop.permute.xlu0 %725
    %727 = vrot.lane.b32.xlu0 %v722, 12
    %v728 = vpop.permute.xlu0 %727
    %v731 = vadd.f32 %v711, %v726
    %v732 = vadd.f32 %v712, %v728
    %v733 = vtanh.pop %v731
    %v734 = vtanh.pop %v732
    %737 = vrot.lane.b32.xlu0 %v733, 24
    %v738 = vpop.permute.xlu0 %737
    %739 = vrot.lane.b32.xlu0 %v734, 24
    %v740 = vpop.permute.xlu0 %739
    %v743 = vmul.f32 %v693, %v738
    %v744 = vmul.f32 %v708, %v740
    %v745 = vld [vmem:[#allocation2 + $0x6] sm:$0x1]
    %v746 = vld [vmem:[#allocation2 + $0xe] sm:$0x1]
    %v749 = vrot.slane %v744, 7
    %v750 = vsel %vm199, %v749, %v743
    %751 = vrot.lane.b32.xlu0 %v750, 92
    %v752 = vpop.permute.xlu0 %751
    %v753 = vsel %vm78, %v752, 0
    %755 = vmatpush.msra.mxu0 0.0
    %756 = vmatpush.msra.mxu0 0.0
    %757 = vmatpush.msra.mxu0 0.0
    %758 = vmatpush.msra.mxu0 0.0
    %759 = vmatpush.msra.mxu0 0.0
    %760 = vmatpush.msra.mxu0 0.0
    %761 = vmatpush.msra.mxu0 0.0
    %762 = vmatpush.msra.mxu0 0.0
    %763 = vmatpush.msra.mxu0 0.0
    %764 = vmatpush.msra.mxu0 0.0
    %765 = vmatpush.msra.mxu0 0.0
    %766 = vmatpush.msra.mxu0 0.0
    %767 = vmatpush.msra.mxu0 0.0
    %768 = vmatpush.msra.mxu0 0.0
    %769 = vmatpush.msra.mxu0 %v84
    %770 = vmatpush.msra.mxu0 %v72
    %771 = vmatmul.f32.gmra.mxu0 %v753
    %v772 = vpop.f32.mrf.mxu0
    %v773 = vadd.f32 0.0, %v772
    %774 = vdwg.mxu0
    %v776 = vrot.slane %v773, 1
    %v779 = vadd.f32 %v745, %v773
    %v780 = vadd.f32 %v746, %v776
    %v781 = vxor.u32 %v779, 2147483648
    %v782 = vxor.u32 %v780, 2147483648
    %v783 = vmul.f32 %v781, 1.442695
    %v784 = vpow.pop %v783
    %v785 = vmul.f32 %v782, 1.442695
    %v786 = vpow.pop %v785
    %v787 = vadd.f32 %v784, 1.0
    %v788 = vadd.f32 %v786, 1.0
    %v789 = vrcp.pop %v787
    %v790 = vmul.f32 %v787, %v789
    %v791 = vsub.f32 1.0, %v790
    %v792 = vmul.f32 %v789, %v791
    %v793 = vadd.f32 %v789, %v792
    %vm794 = vweird.f32 %v787
    %vm795 = vweird.f32 %v789
    %vm796 = vmor %vm794, %vm795
    %v797 = vsel %vm796, %v789, %v793
    %v798 = vand.u32 2147483647, %v787
    %vm799 = vcmp.eq.f32.partialorder %v798, 8.507059e+37
    %v800 = vand.u32 %v787, 2147483648
    %v801 = vor.u32 1.1754944e-38, %v800
    %v802 = vsel %vm799, %v801, %v797
    %v803 = vmul.f32 1.0, %v802
    %v804 = vrcp.pop %v788
    %v805 = vmul.f32 %v788, %v804
    %v806 = vsub.f32 1.0, %v805
    %v807 = vmul.f32 %v804, %v806
    %v808 = vadd.f32 %v804, %v807
    %vm809 = vweird.f32 %v788
    %vm810 = vweird.f32 %v804
    %vm811 = vmor %vm809, %vm810
    %v812 = vsel %vm811, %v804, %v808
    %v813 = vand.u32 2147483647, %v788
    %vm814 = vcmp.eq.f32.partialorder %v813, 8.507059e+37
    %v815 = vand.u32 %v788, 2147483648
    %v816 = vor.u32 1.1754944e-38, %v815
    %v817 = vsel %vm814, %v816, %v812
    %v818 = vmul.f32 1.0, %v817
    %v819 = vtanh.pop %v779
    %v820 = vtanh.pop %v780
    %v821 = vmul.f32 %v803, %v731
    %v822 = vmul.f32 %v818, %v732
    %825 = vrot.lane.b32.xlu0 %v819, 104
    %v826 = vpop.permute.xlu0 %825
    %827 = vrot.lane.b32.xlu0 %v820, 104
    %v828 = vpop.permute.xlu0 %827
    %v831 = vmul.f32 %v803, %v826
    %v832 = vmul.f32 %v818, %v828
    %835 = vrot.lane.b32.xlu0 %v831, 12
    %v836 = vpop.permute.xlu0 %835
    %837 = vrot.lane.b32.xlu0 %v832, 12
    %v838 = vpop.permute.xlu0 %837
    %v841 = vadd.f32 %v821, %v836
    %v842 = vadd.f32 %v822, %v838
    %v843 = vtanh.pop %v841
    %v844 = vtanh.pop %v842
    %847 = vrot.lane.b32.xlu0 %v843, 24
    %v848 = vpop.permute.xlu0 %847
    %849 = vrot.lane.b32.xlu0 %v844, 24
    %v850 = vpop.permute.xlu0 %849
    %v853 = vmul.f32 %v803, %v848
    %v854 = vmul.f32 %v818, %v850
    %v855 = vld [vmem:[#allocation2 + $0x7] sm:$0x1]
    %v856 = vld [vmem:[#allocation2 + $0xf] sm:$0x1]
    %v859 = vrot.slane %v854, 7
    %v860 = vsel %vm199, %v859, %v853
    %861 = vrot.lane.b32.xlu0 %v860, 92
    %v862 = vpop.permute.xlu0 %861
    %v863 = vsel %vm78, %v862, 0
    %865 = vmatpush.msra.mxu0 0.0
    %866 = vmatpush.msra.mxu0 0.0
    %867 = vmatpush.msra.mxu0 0.0
    %868 = vmatpush.msra.mxu0 0.0
    %869 = vmatpush.msra.mxu0 0.0
    %870 = vmatpush.msra.mxu0 0.0
    %871 = vmatpush.msra.mxu0 0.0
    %872 = vmatpush.msra.mxu0 0.0
    %873 = vmatpush.msra.mxu0 0.0
    %874 = vmatpush.msra.mxu0 0.0
    %875 = vmatpush.msra.mxu0 0.0
    %876 = vmatpush.msra.mxu0 0.0
    %877 = vmatpush.msra.mxu0 0.0
    %878 = vmatpush.msra.mxu0 0.0
    %879 = vmatpush.msra.mxu0 %v84
    %880 = vmatpush.msra.mxu0 %v72
    %881 = vmatmul.f32.gmra.mxu0 %v863
    %v882 = vpop.f32.mrf.mxu0
    %v883 = vadd.f32 0.0, %v882
    %884 = vdwg.mxu0
    %v886 = vrot.slane %v883, 1
    %v889 = vadd.f32 %v855, %v883
    %v890 = vadd.f32 %v856, %v886
    %v891 = vxor.u32 %v889, 2147483648
    %v892 = vxor.u32 %v890, 2147483648
    %v893 = vmul.f32 %v891, 1.442695
    %v894 = vpow.pop %v893
    %v895 = vmul.f32 %v892, 1.442695
    %v896 = vpow.pop %v895
    %v897 = vadd.f32 %v894, 1.0
    %v898 = vadd.f32 %v896, 1.0
    %v899 = vrcp.pop %v897
    %v900 = vmul.f32 %v897, %v899
    %v901 = vsub.f32 1.0, %v900
    %v902 = vmul.f32 %v899, %v901
    %v903 = vadd.f32 %v899, %v902
    %vm904 = vweird.f32 %v897
    %vm905 = vweird.f32 %v899
    %vm906 = vmor %vm904, %vm905
    %v907 = vsel %vm906, %v899, %v903
    %v908 = vand.u32 2147483647, %v897
    %vm909 = vcmp.eq.f32.partialorder %v908, 8.507059e+37
    %v910 = vand.u32 %v897, 2147483648
    %v911 = vor.u32 1.1754944e-38, %v910
    %v912 = vsel %vm909, %v911, %v907
    %v913 = vmul.f32 1.0, %v912
    %v914 = vrcp.pop %v898
    %v915 = vmul.f32 %v898, %v914
    %v916 = vsub.f32 1.0, %v915
    %v917 = vmul.f32 %v914, %v916
    %v918 = vadd.f32 %v914, %v917
    %vm919 = vweird.f32 %v898
    %vm920 = vweird.f32 %v914
    %vm921 = vmor %vm919, %vm920
    %v922 = vsel %vm921, %v914, %v918
    %v923 = vand.u32 2147483647, %v898
    %vm924 = vcmp.eq.f32.partialorder %v923, 8.507059e+37
    %v925 = vand.u32 %v898, 2147483648
    %v926 = vor.u32 1.1754944e-38, %v925
    %v927 = vsel %vm924, %v926, %v922
    %v928 = vmul.f32 1.0, %v927
    %v929 = vtanh.pop %v889
    %v930 = vtanh.pop %v890
    %v931 = vmul.f32 %v913, %v841
    %v932 = vmul.f32 %v928, %v842
    %935 = vrot.lane.b32.xlu0 %v929, 104
    %v936 = vpop.permute.xlu0 %935
    %937 = vrot.lane.b32.xlu0 %v930, 104
    %v938 = vpop.permute.xlu0 %937
    %v941 = vmul.f32 %v913, %v936
    %v942 = vmul.f32 %v928, %v938
    %945 = vrot.lane.b32.xlu0 %v941, 12
    %v946 = vpop.permute.xlu0 %945
    %947 = vrot.lane.b32.xlu0 %v942, 12
    %v948 = vpop.permute.xlu0 %947
    %v951 = vadd.f32 %v931, %v946
    %v952 = vadd.f32 %v932, %v948
    %v953 = vtanh.pop %v951
    %v954 = vtanh.pop %v952
    %957 = vrot.lane.b32.xlu0 %v953, 24
    %v958 = vpop.permute.xlu0 %957
    %959 = vrot.lane.b32.xlu0 %v954, 24
    %v960 = vpop.permute.xlu0 %959
    %v963 = vmul.f32 %v913, %v958
    %v964 = vmul.f32 %v928, %v960
    %v967 = vrot.slane %v964, 7
    %v968 = vsel %vm199, %v967, %v963
    %969 = vrot.lane.b32.xlu0 %v968, 92
    %v970 = vpop.permute.xlu0 %969
    %vm972 = vcmask 91136
    %973 = vst.msk [vmem:[#allocation3] sm:$0x3] %vm972, %v970
    // Predicated region
    $region26: #{tpu_custom_call.1} parent=1 // pred_check
      _
    $region27: #{tpu_custom_call.1} parent=1 // pred_check_branch
      %975 = sbr.rel (0) target = $region29
    $region28: #{tpu_custom_call.1} parent=1 // pred_region
      %977 = vsyncadd [#allocation4], 0
      %s979 = sshll.u32 [#allocation3], 4
      %s980 = int_to_ptr.vmem [resolvable:$true] %s979
      %s981 = sshll.u32 %s6, 4
      %s982 = int_to_ptr.hbm [resolvable:$true] %s981
      %984 = dma.vmem_to_hbm [thread:$0]  %s980, 32, %s982, [#allocation4]
    $region29: #{tpu_custom_call.1} parent=1 // pred_fallthru
      _
    // Predicated region
    $region30: #{tpu_custom_call.1} parent=1 // pred_check
      _
    $region31: #{tpu_custom_call.1} parent=1 // pred_check_branch
      %986 = sbr.rel (0) target = $region33
    $region32: #{tpu_custom_call.1} parent=1 // pred_region
      %988 = dma.done [#allocation4], 32
    $region33: #{tpu_custom_call.1} parent=1 // pred_fallthru
      _
    %989 = vsyncpa [#allocation4], 1

</llo_original>
